<compile_context>
chip_gen: v7x
topology: tpu7x:2x2x1
jax: 0.10.0
libtpu: 0.0.40
codegen_flags: <defaults>
</compile_context>

<pallas_src>
import functools
import math

import jax
import jax.numpy as jnp
from jax import lax
from jax.experimental import pallas as pl
from jax.experimental.pallas import tpu as pltpu


def make_pe_table(d_model: int, max_len: int = 5000) -> jnp.ndarray:
    """Sinusoidal positional-encoding table, shape (max_len, d_model)."""
    position = jnp.arange(max_len, dtype=jnp.float32)[:, None]            # (L, 1)
    div_term = jnp.exp(jnp.arange(0, d_model, 2, dtype=jnp.float32)
                       * (-math.log(10000.0) / d_model))                  # (D/2,)
    sin = jnp.sin(position * div_term)                                    # (L, D/2)
    cos = jnp.cos(position * div_term)                                    # (L, D/2)
    # even columns = sin, odd columns = cos (matches the PyTorch module)
    return jnp.stack([sin, cos], axis=-1).reshape(max_len, d_model)


# ----------------------------- kernels ------------------------------------- #

def _pe_add_kernel(x_ref, pe_ref, o_ref):
    # Pure streaming add: vld + vadd + wide unmasked vst. pe broadcasts over the
    # leading (batch / size-1) dim of the block.
    o_ref[...] = (x_ref[...] + pe_ref[...]).astype(o_ref.dtype)


def _mix32(x):
    # lowbias32 finalizer: full-avalanche bijection on uint32 (VPU int ops only).
    x = x ^ (x >> jnp.uint32(16))
    x = x * jnp.uint32(0x7FEB352D)
    x = x ^ (x >> jnp.uint32(15))
    x = x * jnp.uint32(0x846CA68B)
    x = x ^ (x >> jnp.uint32(16))
    return x


def _pe_add_dropout_kernel(seed_ref, x_ref, pe_ref, o_ref, *, p, grid_ndim):
    y = x_ref[...] + pe_ref[...]

    # Flat grid-step id (1-D or 2-D grids used here) -> unique stream per tile.
    pid = pl.program_id(0)
    for ax in range(1, grid_ndim):
        pid = pid * pl.num_programs(ax) + pl.program_id(ax)

    seed_u = seed_ref[0].astype(jnp.uint32)
    pid_u = pid.astype(jnp.uint32)
    # Per-block hash constant (scalar), then per-element counter, both mixed.
    h = _mix32(seed_u * jnp.uint32(0x9E3779B1)
               ^ (pid_u + jnp.uint32(1)) * jnp.uint32(0x85EBCA77))

    # Linear element index within the block (rank-generic).
    lin = None
    mult = 1
    for ax in range(y.ndim - 1, -1, -1):
        term = lax.broadcasted_iota(jnp.int32, y.shape, ax).astype(jnp.uint32)
        term = term * jnp.uint32(mult)
        lin = term if lin is None else lin + term
        mult *= y.shape[ax]

    bits = _mix32(lin ^ h)
    # Integer-threshold dropout: keep iff bits >= round(p * 2^32); no u32->f32.
    thresh = jnp.uint32(min(int(round(p * 2.0 ** 32)), 2 ** 32 - 1))
    scale = jnp.asarray(1.0 / (1.0 - p), dtype=y.dtype)
    o_ref[...] = jnp.where(bits >= thresh, y * scale,
                           jnp.zeros_like(y)).astype(o_ref.dtype)


# ----------------------------- helpers -------------------------------------- #

def _vmem_budgets():
    """(per-tile byte budget, vmem_limit_bytes) derived from the chip's VMEM."""
    cap = 64 * 1024 * 1024                       # conservative default (v7x per-TC)
    try:
        info = pltpu.get_tpu_info()
        v = getattr(info, "vmem_capacity_bytes", None)
        if v:
            cap = int(v)
    except Exception:
        pass
    tile_budget = max(2 * 1024 * 1024, min(8 * 1024 * 1024, cap // 16))
    vmem_limit = max(16 * 1024 * 1024, min(cap // 2, 96 * 1024 * 1024))
    return tile_budget, vmem_limit


def _largest_divisor(n: int, cap: int, step: int = 1):
    """Largest d with d % step == 0, d <= min(n, cap), n % d == 0 (or None)."""
    best, d, top = None, step, min(n, cap)
    while d <= top:
        if n % d == 0:
            best = d
        d += step
    return best


# ----------------------------- wrapper -------------------------------------- #

def positional_encoding(x, pe_table, *, p: float = 0.1, training: bool = False,
                        seed: int = 0, tile_budget_bytes=None):
    """x: (B, S, D).  Returns x + pe[:S] (with inverted dropout if training)."""
    B, S, D = x.shape
    if not (0.0 <= p < 1.0):
        raise ValueError("dropout p must be in [0, 1)")
    needs_rng = training and p > 0.0
    dtype = x.dtype
    itemsize = jnp.dtype(dtype).itemsize
    pack = max(8, 32 // itemsize)                # sublane packing: f32=8, bf16=16, i8=32

    budget, vmem_limit = _vmem_budgets()
    if tile_budget_bytes is not None:
        budget = int(tile_budget_bytes)

    # dtype-matched pe: halves the pe stream for bf16 x (intentional: the add is
    # then done in x.dtype rather than promoting to f32 like PyTorch would).
    pe_sd = pe_table[:S, :].astype(dtype)        # (S, D)

    if D % 128 == 0 and S % pack == 0:
        # ---- lane-dense 3-D row tiling, pe fetched once --------------------
        x_in = x
        pe_arg = pe_sd[None]                     # (1, S, D)
        cap_rows = max(pack, (budget // (D * itemsize)) // pack * pack)
        tile_r = _largest_divisor(S, min(S, cap_rows), pack)

        if tile_r == S:
            # Case A: whole sequence(s) per block. Group k sequences so tiles
            # approach the budget; keep >= 2 grid steps for v7x's 2 TCs.
            k_max = max(1, budget // (S * D * itemsize))
            k_cap = max(1, B // 2) if B > 1 else 1
            k = _largest_divisor(B, min(k_max, k_cap), 1) or 1
            grid = (B // k,)
            x_spec = pl.BlockSpec((k, S, D), lambda g, *_: (g, 0, 0))
            pe_spec = pl.BlockSpec((1, S, D), lambda g, *_: (0, 0, 0))   # constant -> 1 DMA
            out_spec = pl.BlockSpec((k, S, D), lambda g, *_: (g, 0, 0))
            semantics = ("parallel",)
        else:
            # Case B: sequence split into tile_r-row tiles. Batch is the inner
            # (fastest) grid axis so the pe block index is constant across
            # consecutive steps and its re-DMA is skipped.
            pbs = S // tile_r
            grid = (pbs, B)
            x_spec = pl.BlockSpec((1, tile_r, D), lambda s, b, *_: (b, s, 0))
            pe_spec = pl.BlockSpec((1, tile_r, D), lambda s, b, *_: (0, s, 0))
            out_spec = pl.BlockSpec((1, tile_r, D), lambda s, b, *_: (b, s, 0))
            semantics = ("parallel", "arbitrary")
        out_struct = jax.ShapeDtypeStruct((B, S, D), dtype)
    else:
        # ---- small / unaligned D: flatten to (B, S*D), lane-dense last dim --
        # TODO(synk): when B < 8 these blocks use < 8 sublanes (masked stores);
        # folding batch into rows would need a per-row pe gather — modest win only.
        n_total = S * D
        x_in = x.reshape(B, n_total)
        pe_arg = pe_sd.reshape(1, n_total)
        cap_n = max(128, min(n_total,
                             (budget // max(1, B * itemsize)) // 128 * 128))
        tile_n = _largest_divisor(n_total, cap_n, 128)
        if tile_n is None:
            tile_n = n_total                     # unaligned total: one full-width block
        elif tile_n == n_total and (n_total // 2) % 128 == 0:
            # Prefer >= 2 grid steps so the pipeliner / both v7x cores have work.
            tile_n = _largest_divisor(n_total, n_total // 2, 128) or tile_n
        grid = (n_total // tile_n,)
        x_spec = pl.BlockSpec((B, tile_n), lambda j, *_: (0, j))
        pe_spec = pl.BlockSpec((1, tile_n), lambda j, *_: (0, j))
        out_spec = pl.BlockSpec((B, tile_n), lambda j, *_: (0, j))
        semantics = ("parallel",)
        out_struct = jax.ShapeDtypeStruct((B, n_total), dtype)

    compiler_params = pltpu.CompilerParams(
        dimension_semantics=semantics,
        vmem_limit_bytes=vmem_limit,
    )
    cost = pl.CostEstimate(
        flops=B * S * D,
        transcendentals=0,
        bytes_accessed=(2 * B * S * D + S * D) * itemsize,
    )

    if needs_rng:
        kernel = functools.partial(_pe_add_dropout_kernel, p=p, grid_ndim=len(grid))
        seed_arr = jnp.asarray([seed], dtype=jnp.int32)
        out = pl.pallas_call(
            kernel,
            out_shape=out_struct,
            grid_spec=pltpu.PrefetchScalarGridSpec(
                num_scalar_prefetch=1,           # seed lands in SMEM
                grid=grid,
                in_specs=[x_spec, pe_spec],
                out_specs=out_spec,
            ),
            compiler_params=compiler_params,
            cost_estimate=cost,
        )(seed_arr, x_in, pe_arg)
    else:
        out = pl.pallas_call(
            _pe_add_kernel,
            out_shape=out_struct,
            grid=grid,
            in_specs=[x_spec, pe_spec],
            out_specs=out_spec,
            compiler_params=compiler_params,
            cost_estimate=cost,
        )(x_in, pe_arg)

    return out.reshape(B, S, D)


# ----------------------------- demo / checks -------------------------------- #

if __name__ == "__main__":
    # Small shapes consistent with the module: batch=2, seq=8, d_model=32.
    B, S, D = 2, 8, 32
    x = jax.random.normal(jax.random.PRNGKey(0), (B, S, D), dtype=jnp.float32)
    pe_table = make_pe_table(D, max_len=5000)

    # Eval-mode forward (dropout identity, like module.eval()).  Small-D path.
    out = jax.block_until_ready(positional_encoding(x, pe_table, p=0.1, training=False))
    ref = x + pe_table[None, :S, :]
    assert out.shape == (B, S, D)
    assert jnp.allclose(out, ref, atol=1e-6), "eval mismatch vs reference"

    # Row-tiled grouped path (case A): D % 128 == 0, several sequences per tile.
    B2, S2, D2 = 4, 64, 256
    x_big = jax.random.normal(jax.random.PRNGKey(1), (B2, S2, D2), dtype=jnp.float32)
    pe_big = make_pe_table(D2, max_len=5000)
    ref_big = x_big + pe_big[None, :S2, :]
    out_big = jax.block_until_ready(
        positional_encoding(x_big, pe_big, p=0.1, training=False))
    assert jnp.allclose(out_big, ref_big, atol=1e-6), "grouped row-tiled path mismatch"

    # Row-tiled split path (case B): tiny tile budget forces the 2-D grid
    # (seq_tiles, batch) with a constant pe block index across the inner axis.
    out_split = jax.block_until_ready(
        positional_encoding(x_big, pe_big, p=0.1, training=False,
                            tile_budget_bytes=32 * 1024))
    assert jnp.allclose(out_split, ref_big, atol=1e-6), "split row-tiled path mismatch"

    # Training mode: every output is either 0 or ref * 1/(1-p), and both occur.
    p = 0.1
    out_tr = jax.block_until_ready(
        positional_encoding(x, pe_table, p=p, training=True, seed=123))
    scaled = ref * jnp.float32(1.0 / (1.0 - p))
    kept = jnp.isclose(out_tr, scaled, atol=1e-5, rtol=1e-5)
    dropped = jnp.isclose(out_tr, 0.0, atol=1e-7)
    assert out_tr.shape == (B, S, D)
    assert bool(jnp.all(kept | dropped)), "dropout output not in {0, scaled}"
    assert bool(jnp.any(kept)) and bool(jnp.any(dropped)), "dropout mask degenerate"

    print("KERNEL_OK")
</pallas_src>

<mosaic_0001>
module attributes {stable_mosaic.version = 11 : i64} {
  func.func @_pe_add_kernel(%arg0: i32, %arg1: memref<2x128xf32, #tpu.memory_space<vmem>>, %arg2: memref<1x128xf32, #tpu.memory_space<vmem>>, %arg3: memref<2x128xf32, #tpu.memory_space<vmem>>) attributes {dimension_semantics = [#tpu.dimension_semantics<parallel>], iteration_bounds = array<i64: 2>, scalar_prefetch = 0 : i64, scratch_operands = 0 : i64, tpu.core_type = #tpu.core_type<tc>, window_params = [{transform_indices = @transform_0, window_bounds = array<i64: 2, 128>}, {transform_indices = @transform_1, window_bounds = array<i64: 1, 128>}, {transform_indices = @transform_2, window_bounds = array<i64: 2, 128>}]} {
    %c0 = arith.constant 0 : index
    %c0_0 = arith.constant 0 : index
    %0 = vector.load %arg1[%c0, %c0_0] : memref<2x128xf32, #tpu.memory_space<vmem>>, vector<2x128xf32>
    %c0_1 = arith.constant 0 : index
    %c0_2 = arith.constant 0 : index
    %1 = vector.load %arg2[%c0_1, %c0_2] : memref<1x128xf32, #tpu.memory_space<vmem>>, vector<1x128xf32>
    %2 = vector.broadcast %1 : vector<1x128xf32> to vector<2x128xf32>
    %3 = arith.addf %0, %2 : vector<2x128xf32>
    %c0_3 = arith.constant 0 : index
    %c0_4 = arith.constant 0 : index
    %4 = vector.load %arg3[%c0_3, %c0_4] : memref<2x128xf32, #tpu.memory_space<vmem>>, vector<2x128xf32>
    tpu.vector_store %arg3[%c0_3, %c0_4], %3 {strides = array<i32>} : memref<2x128xf32, #tpu.memory_space<vmem>>, vector<2x128xf32>,
    return
  }
  func.func @transform_0(%arg0: i32) -> (i32, i32) {
    %c0_i32 = arith.constant 0 : i32
    %c0_i32_0 = arith.constant 0 : i32
    return %c0_i32, %arg0 : i32, i32
  }
  func.func @transform_1(%arg0: i32) -> (i32, i32) {
    %c0_i32 = arith.constant 0 : i32
    %c0_i32_0 = arith.constant 0 : i32
    return %c0_i32, %arg0 : i32, i32
  }
  func.func @transform_2(%arg0: i32) -> (i32, i32) {
    %c0_i32 = arith.constant 0 : i32
    %c0_i32_0 = arith.constant 0 : i32
    return %c0_i32, %arg0 : i32, i32
  }
}

</mosaic_0001>

<llo_original>
// kernel: tpu_custom_call.1
$region0: #{tpu_custom_call.1}
  #allocation0 [shape = 'u32[]', space=smem, size = 0x4, offset = 0x4, fixed_abs, tag = 'smem constant byte address 0x4 - core index']
  #allocation1 [shape = 'u32[144,128]{1,0:T(1,128)}', space=vmem, size = 0x12000, scoped, tag = 'internal scratch']
  %s0 = inlined_call_operand.hbm [shape: f32[2,256], index: 0, kind: input, shape index: {}]
  %s1 = inlined_call_operand.vmem [shape: f32[1,256], index: 1, kind: input, shape index: {}]
  %s2 = inlined_call_operand.hbm [shape: f32[2,256], index: 2, kind: output, shape index: {}]
  %s3 = sld [smem:[#allocation0]]
  $region45: #{tpu_custom_call.1} parent=0
    _
  %s5 = ssub.s32 1, %s3
  %s6 = scalar_select 0, %s5, %s3
  $region1: #{tpu_custom_call.1} parent=0
    #allocation2 [shape = 'u8[2048]{0}', space=vmem, size = 0x800, scoped, tag = 'input window, operand 0']
    #allocation3 [shape = 's32[2]{0}', space=sflag, size = 0x8, scoped, tag = 'scoped memory for tpu_custom_call.1']
    #allocation4 [shape = 's32[2]{0}', space=sflag, size = 0x8, scoped, tag = 'scoped memory for tpu_custom_call.1']
    #allocation5 [shape = 'u8[2048]{0}', space=vmem, size = 0x800, scoped, tag = 'output window, operand 0']
    %7 = vsyncpa [#allocation3], 0
    %s8 = scalar_lea.sflag [#allocation3], 1
    %9 = vsyncpa %s8, 0
    %10 = vsyncpa [#allocation4], 0
    %s11 = scalar_lea.sflag [#allocation4], 1
    %12 = vsyncpa %s11, 0
    loop: start=0, step=1, limit=4
    $region2: #{tpu_custom_call.1} parent=1 // loop_pre_header
      _
    $region3: #{tpu_custom_call.1} parent=1 // loop_header
      %s14 = sphi 0, %s18
      %p15 = scmp.ge.s32.totalorder %s14, 4
      %s24 = sphi 0, %s26
      %s27 = sphi 0, %s24
      %s28 = sphi 0, %s27
      %s44 = sphi 0, %s28
      %s50 = sphi 0, %s52
      %s53 = sphi 0, %s50
      %s54 = sphi 0, %s53
      %s70 = sphi 0, %s54
      %s76 = sphi 0, %s78
      %s79 = sphi 0, %s76
      %s80 = sphi 0, %s79
      %s96 = sphi 0, %s80
    $region4: #{tpu_custom_call.1} parent=1 // loop_header_branch
      %17 = sbr.rel (%p15) target = $region8
    $region5: #{tpu_custom_call.1} parent=1 // loop_body
      %s19 = ssub.s32 %s14, 1
      %s20 = ssub.s32 %s14, 2
      %s21 = sadd.s32 %s14, 1
      %s22 = ssub.s32 %s14, %s21
      %p23 = scmp.eq.s32.totalorder %s22, 0
      %s25 = sadd.s32 %s24, 1
      %s26 = scalar_select %p23, %s24, %s25
      %p29 = pneg %p23
      %p30 = scmp.eq.s32.totalorder %s14, 1
      %p31 = por %p29, %p30
      %p32 = scmp.ne.s32.totalorder %s24, %s27
      %p33 = scmp.eq.s32.totalorder %s14, 0
      %p34 = por %p32, %p33
      %p35 = scmp.ne.s32.totalorder %s24, %s27
      %p36 = scmp.eq.s32.totalorder %s19, 1
      %p37 = por %p35, %p36
      %p38 = scmp.ne.s32.totalorder %s27, %s28
      %p39 = scmp.eq.s32.totalorder %s19, 0
      %p40 = por %p38, %p39
      %p41 = scmp.ne.s32.totalorder %s27, %s28
      %p42 = scmp.eq.s32.totalorder %s20, 1
      %p43 = por %p41, %p42
      %p45 = scmp.ne.s32.totalorder %s28, %s44
      %p46 = scmp.eq.s32.totalorder %s20, 0
      %p47 = por %p45, %p46
      %s48 = ssub.s32 %s14, %s21
      %p49 = scmp.eq.s32.totalorder %s48, 0
      %s51 = sadd.s32 %s50, 1
      %s52 = scalar_select %p49, %s50, %s51
      %p55 = pneg %p49
      %p56 = scmp.eq.s32.totalorder %s14, 1
      %p57 = por %p55, %p56
      %p58 = scmp.ne.s32.totalorder %s50, %s53
      %p59 = scmp.eq.s32.totalorder %s14, 0
      %p60 = por %p58, %p59
      %p61 = scmp.ne.s32.totalorder %s50, %s53
      %p62 = scmp.eq.s32.totalorder %s19, 1
      %p63 = por %p61, %p62
      %p64 = scmp.ne.s32.totalorder %s53, %s54
      %p65 = scmp.eq.s32.totalorder %s19, 0
      %p66 = por %p64, %p65
      %p67 = scmp.ne.s32.totalorder %s53, %s54
      %p68 = scmp.eq.s32.totalorder %s20, 1
      %p69 = por %p67, %p68
      %p71 = scmp.ne.s32.totalorder %s54, %s70
      %p72 = scmp.eq.s32.totalorder %s20, 0
      %p73 = por %p71, %p72
      %s74 = ssub.s32 %s14, %s21
      %p75 = scmp.eq.s32.totalorder %s74, 0
      %s77 = sadd.s32 %s76, 1
      %s78 = scalar_select %p75, %s76, %s77
      %p81 = pneg %p75
      %p82 = scmp.eq.s32.totalorder %s14, 1
      %p83 = por %p81, %p82
      %p84 = scmp.ne.s32.totalorder %s76, %s79
      %p85 = scmp.eq.s32.totalorder %s14, 0
      %p86 = por %p84, %p85
      %p87 = scmp.ne.s32.totalorder %s76, %s79
      %p88 = scmp.eq.s32.totalorder %s19, 1
      %p89 = por %p87, %p88
      %p90 = scmp.ne.s32.totalorder %s79, %s80
      %p91 = scmp.eq.s32.totalorder %s19, 0
      %p92 = por %p90, %p91
      %p93 = scmp.ne.s32.totalorder %s79, %s80
      %p94 = scmp.eq.s32.totalorder %s20, 1
      %p95 = por %p93, %p94
      %p97 = scmp.ne.s32.totalorder %s80, %s96
      %p98 = scmp.eq.s32.totalorder %s20, 0
      %p99 = por %p97, %p98
      %p100 = scmp.le.s32.totalorder 1, %s14
      %p101 = scmp.lt.s32.totalorder %s14, 3
      %p102 = pnand %p100, %p101
      %p103 = pneg %p102
      // Predicated region
      $region9: #{tpu_custom_call.1} parent=5 // pred_check
        _
      $region10: #{tpu_custom_call.1} parent=5 // pred_check_branch
        %105 = sbr.rel (%p102) target = $region12
      $region11: #{tpu_custom_call.1} parent=5 // pred_region
        %s106 = ssub.s32 %s14, 1
      $region12: #{tpu_custom_call.1} parent=5 // pred_fallthru
        _
      %p107 = scmp.lt.s32.totalorder %s14, 2
      // Predicated region
      $region13: #{tpu_custom_call.1} parent=5 // pred_check
        %p108 = pneg %p107
      $region14: #{tpu_custom_call.1} parent=5 // pred_check_branch
        %110 = sbr.rel (%p108) target = $region16
      $region15: #{tpu_custom_call.1} parent=5 // pred_region
        // Predicated region
        $region17: #{tpu_custom_call.1} parent=15 // pred_check
          %p111 = pneg %p34
        $region18: #{tpu_custom_call.1} parent=15 // pred_check_branch
          %113 = sbr.rel (%p111) target = $region20
        $region19: #{tpu_custom_call.1} parent=15 // pred_region
          %s114 = sand.u32 %s24, 1
          %s115 = scalar_lea.sflag [#allocation3], %s114
          %s116 = sand.u32 %s24, 1
          %s117 = smul.addr %s116, 2
          %s118 = scalar_lea.vmem [#allocation2], %s117
          %s120 = ssub.s32 32, 32
          %121 = vsyncadd %s115, %s120
          %s122 = smul.addr %s14, 32
          %s123 = scalar_lea.hbm %s0, %s122
          %s125 = sshll.u32 %s118, 4
          %s126 = int_to_ptr.vmem [resolvable:$true] %s125
          %128 = dma.hbm_to_vmem [thread:$0]  %s123, 32, %s126, %s115
        $region20: #{tpu_custom_call.1} parent=15 // pred_fallthru
          _
        // Predicated region
        $region21: #{tpu_custom_call.1} parent=15 // pred_check
          %p129 = pneg %p60
        $region22: #{tpu_custom_call.1} parent=15 // pred_check_branch
          %131 = sbr.rel (%p129) target = $region24
        $region23: #{tpu_custom_call.1} parent=15 // pred_region
          %p132 = scmp.lt.s32.totalorder %s14, 1
          %s133 = scalar_select %p132, %s14, 1
          %s134 = scalar_lea.vmem %s1, %s133
        $region24: #{tpu_custom_call.1} parent=15 // pred_fallthru
          _
      $region16: #{tpu_custom_call.1} parent=5 // pred_fallthru
        _
      %p135 = scmp.le.s32.totalorder 1, %s14
      %p136 = scmp.lt.s32.totalorder %s14, 3
      %p137 = pnand %p135, %p136
      %p138 = pneg %p137
      // Predicated region
      $region25: #{tpu_custom_call.1} parent=5 // pred_check
        _
      $region26: #{tpu_custom_call.1} parent=5 // pred_check_branch
        %140 = sbr.rel (%p137) target = $region28
      $region27: #{tpu_custom_call.1} parent=5 // pred_region
        %s141 = ssub.s32 %s14, 1
        %s142 = sand.u32 %s27, 1
        %s143 = scalar_lea.sflag [#allocation3], %s142
        %s144 = sand.u32 %s27, 1
        %s145 = smul.addr %s144, 2
        %s146 = scalar_lea.vmem [#allocation2], %s145
        // Predicated region
        $region29: #{tpu_custom_call.1} parent=27 // pred_check
          %p147 = pneg %p40
        $region30: #{tpu_custom_call.1} parent=27 // pred_check_branch
          %149 = sbr.rel (%p147) target = $region32
        $region31: #{tpu_custom_call.1} parent=27 // pred_region
          %150 = dma.done %s143, 32
        $region32: #{tpu_custom_call.1} parent=27 // pred_fallthru
          _
        %s151 = sand.u32 %s27, 1
        %s152 = scalar_lea.sflag [#allocation3], %s151
        %s153 = sand.u32 %s27, 1
        %s154 = smul.addr %s153, 2
        %s155 = scalar_lea.vmem [#allocation2], %s154
        %p156 = pneg %p40
        %p157 = pneg %p37
        %p158 = scmp.lt.s32.totalorder %s19, 1
        %s159 = scalar_select %p158, %s19, 1
        %s160 = scalar_lea.vmem %s1, %s159
        %p161 = pneg %p66
        %p162 = pneg %p63
        %p163 = pneg %p92
        %p164 = pneg %p89
        %s165 = sand.u32 %s79, 1
        %s166 = scalar_lea.sflag [#allocation4], %s165
        %s167 = sand.u32 %s79, 1
        %s168 = smul.addr %s167, 2
        %s169 = scalar_lea.vmem [#allocation5], %s168
        %p170 = scmp.lt.s32.totalorder %s19, 1
        %s171 = scalar_select %p170, %s19, 1
        %s172 = scalar_lea.vmem %s1, %s171
        %v173 = vld [vmem:[%s146] sm:$0x3]
        %v174 = vld [vmem:[%s172] sm:$0x1]
        %v176 = vlaneseq
        %v177 = vshrl.u32 %v176, 7
        %v178 = vsub.s32 0, %v177
        %v179 = vrot.slane %v174, %v178
        %v181 = vadd.f32 %v173, %v179
        %182 = vst [vmem:[%s169] sm:$0x3] %v181
        %s183 = sand.u32 %s79, 1
        %s184 = scalar_lea.sflag [#allocation4], %s183
        %s185 = sand.u32 %s79, 1
        %s186 = smul.addr %s185, 2
        %s187 = scalar_lea.vmem [#allocation5], %s186
        // Predicated region
        $region33: #{tpu_custom_call.1} parent=27 // pred_check
          %p188 = pneg %p89
        $region34: #{tpu_custom_call.1} parent=27 // pred_check_branch
          %190 = sbr.rel (%p188) target = $region36
        $region35: #{tpu_custom_call.1} parent=27 // pred_region
          %s192 = ssub.s32 32, 32
          %193 = vsyncadd %s184, %s192
          %s194 = smul.addr %s19, 32
          %s195 = scalar_lea.hbm %s2, %s194
          %s197 = sshll.u32 %s187, 4
          %s198 = int_to_ptr.vmem [resolvable:$true] %s197
          %200 = dma.vmem_to_hbm [thread:$0]  %s198, 32, %s195, %s184
        $region36: #{tpu_custom_call.1} parent=27 // pred_fallthru
          _
      $region28: #{tpu_custom_call.1} parent=5 // pred_fallthru
        _
      %p201 = scmp.le.s32.totalorder 2, %s14
      // Predicated region
      $region37: #{tpu_custom_call.1} parent=5 // pred_check
        %p202 = pneg %p201
      $region38: #{tpu_custom_call.1} parent=5 // pred_check_branch
        %204 = sbr.rel (%p202) target = $region40
      $region39: #{tpu_custom_call.1} parent=5 // pred_region
        %s205 = ssub.s32 %s14, 2
        // Predicated region
        $region41: #{tpu_custom_call.1} parent=39 // pred_check
          %p206 = pneg %p95
        $region42: #{tpu_custom_call.1} parent=39 // pred_check_branch
          %208 = sbr.rel (%p206) target = $region44
        $region43: #{tpu_custom_call.1} parent=39 // pred_region
          %s209 = sand.u32 %s80, 1
          %s210 = scalar_lea.sflag [#allocation4], %s209
          %s211 = sand.u32 %s80, 1
          %s212 = smul.addr %s211, 2
          %s213 = scalar_lea.vmem [#allocation5], %s212
          %214 = dma.done %s210, 32
        $region44: #{tpu_custom_call.1} parent=39 // pred_fallthru
          _
      $region40: #{tpu_custom_call.1} parent=5 // pred_fallthru
        _
    $region6: #{tpu_custom_call.1} parent=1 // loop_footer
      %s18 = sadd.s32 1, %s14
    $region7: #{tpu_custom_call.1} parent=1 // loop_footer_branch
      %13 = sbr.rel target = $region3
    $region8: #{tpu_custom_call.1} parent=1 // loop_exit
      _
    %215 = vsyncpa [#allocation3], 1
    %s216 = scalar_lea.sflag [#allocation3], 1
    %217 = vsyncpa %s216, 1
    %218 = vsyncpa [#allocation4], 1
    %s219 = scalar_lea.sflag [#allocation4], 1
    %220 = vsyncpa %s219, 1

</llo_original>
